<compile_context>
chip_gen: v7x
topology: tpu7x:2x2x1
jax: 0.10.0
libtpu: 0.0.40
codegen_flags: <defaults>
</compile_context>

<pallas_src>
import functools

import jax
import jax.numpy as jnp
from jax.experimental import pallas as pl
from jax.experimental.pallas import tpu as pltpu


def _bpmll_kernel(c_ref, y_ref, o_ref, *, bias, inv_batch):
    c = c_ref[...].astype(jnp.float32)        # (tb, N)
    y = y_ref[...].astype(jnp.float32)        # (tb, N)
    y_bar = 1.0 - y                           # (tb, N)

    # Separable form of the pairwise sum (exact, per row):
    #   sum_{k,l} y_k * ybar_l * exp(c_l - c_k)
    #     = (sum_k y_k * exp(s - c_k)) * (sum_l ybar_l * exp(c_l - s))
    # with a per-row shift s to keep both exponentials bounded.
    s = 0.5 * (jnp.max(c, axis=1, keepdims=True) +
               jnp.min(c, axis=1, keepdims=True))                  # (tb, 1)
    pos = jnp.sum(y * jnp.exp(s - c), axis=1, keepdims=True)       # (tb, 1)
    neg = jnp.sum(y_bar * jnp.exp(c - s), axis=1, keepdims=True)   # (tb, 1)
    pair_sum = pos * neg                                           # (tb, 1)

    y_norm = jnp.sum(y, axis=1, keepdims=True) ** bias[0]          # (tb, 1)
    y_bar_norm = jnp.sum(y_bar, axis=1, keepdims=True) ** bias[1]  # (tb, 1)

    # TODO(synk): the PyTorch runtime assert (no all-positive / all-negative
    # rows) is not reproduced in-kernel; degenerate rows produce inf/nan.
    per_sample = pair_sum * pl.reciprocal(y_norm * y_bar_norm, approx=True)

    # Per-tile partial of the batch mean, broadcast into a lane-dense row.
    tile_partial = jnp.sum(per_sample) * inv_batch
    o_ref[...] = jnp.full(o_ref.shape, tile_partial, dtype=o_ref.dtype)


def _default_tile_batch(batch, n_labels):
    # Keep 2 inputs x 2 pipeline buffers of (tb, N) f32 well under the scoped
    # VMEM default on every generation (16 MiB v5e, 32 MiB v6e/v7x).
    budget_bytes = 8 * 1024 * 1024
    cap = max(8, budget_bytes // (2 * 2 * n_labels * 4))
    for cand in (1024, 512, 256, 128, 64, 32, 16, 8):
        if cand <= cap and batch % cand == 0:
            return cand
    # Fall back to the full batch dim (always a legal block extent).
    return batch


def bpmll_loss(c, y, bias=(1, 1), tile_batch=None):
    assert len(bias) == 2 and all(isinstance(b, int) and b > 0 for b in bias), \
        "bias must be positive integers"
    B, N = c.shape
    tb = tile_batch if tile_batch is not None else _default_tile_batch(B, N)
    assert B % tb == 0, "batch must be divisible by tile_batch"
    num_tiles = B // tb

    kernel = functools.partial(_bpmll_kernel, bias=tuple(bias), inv_batch=1.0 / B)
    partials = pl.pallas_call(
        kernel,
        out_shape=jax.ShapeDtypeStruct((num_tiles, 128), jnp.float32),
        grid_spec=pltpu.PrefetchScalarGridSpec(
            num_scalar_prefetch=0,
            grid=(num_tiles,),
            in_specs=[
                pl.BlockSpec((tb, N), lambda i: (i, 0)),
                pl.BlockSpec((tb, N), lambda i: (i, 0)),
            ],
            out_specs=pl.BlockSpec((1, 128), lambda i: (i, 0)),
        ),
        compiler_params=pltpu.CompilerParams(
            dimension_semantics=("parallel",)),
    )(c, y)
    # Each tile wrote its partial (already scaled by 1/B) broadcast across the
    # 128 lanes; read lane 0 and finish the mean here.
    return jnp.sum(partials[:, 0])


def _bpmll_loss_ref(c, y, bias=(1, 1)):
    """Pure-JAX reference mirroring the PyTorch forward (pairwise form)."""
    y = y.astype(jnp.float32)
    y_bar = 1.0 - y
    y_norm = jnp.sum(y, axis=1) ** bias[0]
    y_bar_norm = jnp.sum(y_bar, axis=1) ** bias[1]
    truth = y[:, :, None] * y_bar[:, None, :]
    expm = jnp.exp(c[:, None, :] - c[:, :, None])
    pair_sum = jnp.sum(truth * expm, axis=(1, 2))
    return jnp.mean(pair_sum / (y_norm * y_bar_norm))


if __name__ == "__main__":
    B, N = 8, 16
    key = jax.random.PRNGKey(0)
    kc, ky = jax.random.split(key)

    c = jax.random.normal(kc, (B, N), dtype=jnp.float32)
    # Binary targets; force at least one positive and one negative per row so
    # the normalization is well defined (mirrors the PyTorch assert).
    y = (jax.random.uniform(ky, (B, N)) > 0.5).astype(jnp.float32)
    y = y.at[:, 0].set(1.0).at[:, 1].set(0.0)

    loss = jax.block_until_ready(bpmll_loss(c, y, bias=(1, 1)))
    ref = jax.block_until_ready(_bpmll_loss_ref(c, y, bias=(1, 1)))

    # Slightly relaxed tolerance: pl.reciprocal(approx=True) is used in-kernel.
    assert jnp.allclose(loss, ref, rtol=2e-3, atol=2e-3), (loss, ref)
    print("KERNEL_OK")
</pallas_src>

<mosaic_0001>
module attributes {stable_mosaic.version = 11 : i64} {
  func.func @_bpmll_kernel(%arg0: i32, %arg1: memref<8x16xf32, #tpu.memory_space<vmem>>, %arg2: memref<8x16xf32, #tpu.memory_space<vmem>>, %arg3: memref<1x128xf32, #tpu.memory_space<vmem>>) attributes {dimension_semantics = [#tpu.dimension_semantics<parallel>], iteration_bounds = array<i64: 1>, scalar_prefetch = 0 : i64, scratch_operands = 0 : i64, tpu.core_type = #tpu.core_type<tc>, window_params = [{transform_indices = @transform_0, window_bounds = array<i64: 8, 16>}, {transform_indices = @transform_1, window_bounds = array<i64: 8, 16>}, {transform_indices = @transform_2, window_bounds = array<i64: 1, 128>}]} {
    %c0 = arith.constant 0 : index
    %c0_0 = arith.constant 0 : index
    %0 = vector.load %arg1[%c0, %c0_0] : memref<8x16xf32, #tpu.memory_space<vmem>>, vector<8x16xf32>
    %c0_1 = arith.constant 0 : index
    %c0_2 = arith.constant 0 : index
    %1 = vector.load %arg2[%c0_1, %c0_2] : memref<8x16xf32, #tpu.memory_space<vmem>>, vector<8x16xf32>
    %cst = arith.constant 1.000000e+00 : f32
    %2 = vector.broadcast %cst : f32 to vector<8x16xf32>
    %3 = arith.subf %2, %1 : vector<8x16xf32>
    %cst_3 = arith.constant dense<0xFF800000> : vector<8xf32>
    %4 = vector.multi_reduction <maximumf>, %0, %cst_3 [1] : vector<8x16xf32> to vector<8xf32>
    %5 = vector.shape_cast %4 : vector<8xf32> to vector<8x1xf32>
    %cst_4 = arith.constant dense<0x7F800000> : vector<8xf32>
    %6 = vector.multi_reduction <minimumf>, %0, %cst_4 [1] : vector<8x16xf32> to vector<8xf32>
    %7 = vector.shape_cast %6 : vector<8xf32> to vector<8x1xf32>
    %8 = arith.addf %5, %7 : vector<8x1xf32>
    %cst_5 = arith.constant 5.000000e-01 : f32
    %9 = vector.broadcast %cst_5 : f32 to vector<8x1xf32>
    %10 = arith.mulf %9, %8 : vector<8x1xf32>
    %11 = vector.broadcast %10 : vector<8x1xf32> to vector<8x16xf32>
    %12 = arith.subf %11, %0 : vector<8x16xf32>
    %13 = math.exp %12 : vector<8x16xf32>
    %14 = arith.mulf %1, %13 : vector<8x16xf32>
    %cst_6 = arith.constant dense<0.000000e+00> : vector<8xf32>
    %15 = vector.multi_reduction <add>, %14, %cst_6 [1] : vector<8x16xf32> to vector<8xf32>
    %16 = vector.shape_cast %15 : vector<8xf32> to vector<8x1xf32>
    %17 = vector.broadcast %10 : vector<8x1xf32> to vector<8x16xf32>
    %18 = arith.subf %0, %17 : vector<8x16xf32>
    %19 = math.exp %18 : vector<8x16xf32>
    %20 = arith.mulf %3, %19 : vector<8x16xf32>
    %cst_7 = arith.constant dense<0.000000e+00> : vector<8xf32>
    %21 = vector.multi_reduction <add>, %20, %cst_7 [1] : vector<8x16xf32> to vector<8xf32>
    %22 = vector.shape_cast %21 : vector<8xf32> to vector<8x1xf32>
    %23 = arith.mulf %16, %22 : vector<8x1xf32>
    %cst_8 = arith.constant dense<0.000000e+00> : vector<8xf32>
    %24 = vector.multi_reduction <add>, %1, %cst_8 [1] : vector<8x16xf32> to vector<8xf32>
    %25 = vector.shape_cast %24 : vector<8xf32> to vector<8x1xf32>
    %cst_9 = arith.constant dense<0.000000e+00> : vector<8xf32>
    %26 = vector.multi_reduction <add>, %3, %cst_9 [1] : vector<8x16xf32> to vector<8xf32>
    %27 = vector.shape_cast %26 : vector<8xf32> to vector<8x1xf32>
    %28 = arith.mulf %25, %27 : vector<8x1xf32>
    %29 = tpu.reciprocal %28 {approx = true} : vector<8x1xf32> -> vector<8x1xf32>
    %30 = arith.mulf %23, %29 : vector<8x1xf32>
    %31 = vector.shape_cast %30 : vector<8x1xf32> to vector<1x8x1xf32>
    %cst_10 = arith.constant dense<0.000000e+00> : vector<1xf32>
    %32 = vector.multi_reduction <add>, %31, %cst_10 [1, 2] : vector<1x8x1xf32> to vector<1xf32>
    %33 = vector.shape_cast %32 : vector<1xf32> to vector<1x1x1xf32>
    %34 = vector.extract %33[0, 0, 0] : f32 from vector<1x1x1xf32>
    %cst_11 = arith.constant 1.250000e-01 : f32
    %35 = arith.mulf %34, %cst_11 : f32
    %36 = vector.broadcast %35 : f32 to vector<1x128xf32>
    %c0_12 = arith.constant 0 : index
    %c0_13 = arith.constant 0 : index
    %37 = vector.load %arg3[%c0_12, %c0_13] : memref<1x128xf32, #tpu.memory_space<vmem>>, vector<1x128xf32>
    tpu.vector_store %arg3[%c0_12, %c0_13], %36 {strides = array<i32>} : memref<1x128xf32, #tpu.memory_space<vmem>>, vector<1x128xf32>,
    return
  }
  func.func @transform_0(%arg0: i32) -> (i32, i32) {
    %c0_i32 = arith.constant 0 : i32
    %c0_i32_0 = arith.constant 0 : i32
    return %arg0, %c0_i32 : i32, i32
  }
  func.func @transform_1(%arg0: i32) -> (i32, i32) {
    %c0_i32 = arith.constant 0 : i32
    %c0_i32_0 = arith.constant 0 : i32
    return %arg0, %c0_i32 : i32, i32
  }
  func.func @transform_2(%arg0: i32) -> (i32, i32) {
    %c0_i32 = arith.constant 0 : i32
    %c0_i32_0 = arith.constant 0 : i32
    return %arg0, %c0_i32 : i32, i32
  }
}

</mosaic_0001>

<llo_original>
// kernel: tpu_custom_call.1
$region0: #{tpu_custom_call.1}
  #allocation0 [shape = 'u32[]', space=smem, size = 0x4, offset = 0x4, fixed_abs, tag = 'smem constant byte address 0x4 - core index']
  #allocation1 [shape = 'u32[144,128]{1,0:T(1,128)}', space=vmem, size = 0x12000, scoped, tag = 'internal scratch']
  %s0 = inlined_call_operand.hbm [shape: f32[8,16], index: 0, kind: input, shape index: {}]
  %s1 = inlined_call_operand.hbm [shape: f32[8,16], index: 1, kind: input, shape index: {}]
  %s2 = inlined_call_operand.hbm [shape: f32[1,128], index: 2, kind: output, shape index: {}]
  %s3 = sld [smem:[#allocation0]]
  $region26: #{tpu_custom_call.1} parent=0
    _
  %s5 = ssub.s32 1, %s3
  %s6 = scalar_select 0, %s5, %s3
  $region1: #{tpu_custom_call.1} parent=0
    #allocation2 [shape = 'u8[4096]{0}', space=vmem, size = 0x1000, scoped, tag = 'input window, operand 0, single buffered']
    #allocation3 [shape = 's32[1]{0}', space=sflag, size = 0x4, scoped, tag = 'scoped memory for tpu_custom_call.1']
    #allocation4 [shape = 's32[1]{0}', space=sflag, size = 0x4, scoped, tag = 'scoped memory for tpu_custom_call.1']
    #allocation5 [shape = 'u8[4096]{0}', space=vmem, size = 0x1000, scoped, tag = 'input window, operand 1, single buffered']
    #allocation6 [shape = 's32[1]{0}', space=sflag, size = 0x4, scoped, tag = 'scoped memory for tpu_custom_call.1']
    #allocation7 [shape = 'u8[512]{0}', space=vmem, size = 0x400, scoped, tag = 'output window, operand 0, single buffered']
    %7 = vsyncpa [#allocation3], 0
    %8 = vsyncpa [#allocation6], 0
    %9 = vsyncpa [#allocation4], 0
    // Predicated region
    $region2: #{tpu_custom_call.1} parent=1 // pred_check
      _
    $region3: #{tpu_custom_call.1} parent=1 // pred_check_branch
      %11 = sbr.rel (0) target = $region5
    $region4: #{tpu_custom_call.1} parent=1 // pred_region
      %s13 = ssub.s32 128, 128
      %14 = vsyncadd [#allocation3], %s13
      %s16 = sshll.u32 [#allocation2], 4
      %s17 = int_to_ptr.vmem [resolvable:$true] %s16
      %19 = dma.hbm_to_vmem [thread:$0]  %s0, 128, %s17, [#allocation3]
    $region5: #{tpu_custom_call.1} parent=1 // pred_fallthru
      _
    // Predicated region
    $region6: #{tpu_custom_call.1} parent=1 // pred_check
      _
    $region7: #{tpu_custom_call.1} parent=1 // pred_check_branch
      %21 = sbr.rel (0) target = $region9
    $region8: #{tpu_custom_call.1} parent=1 // pred_region
      %s23 = ssub.s32 128, 128
      %24 = vsyncadd [#allocation6], %s23
      %s26 = sshll.u32 [#allocation5], 4
      %s27 = int_to_ptr.vmem [resolvable:$true] %s26
      %29 = dma.hbm_to_vmem [thread:$0]  %s1, 128, %s27, [#allocation6]
    $region9: #{tpu_custom_call.1} parent=1 // pred_fallthru
      _
    // Predicated region
    $region10: #{tpu_custom_call.1} parent=1 // pred_check
      _
    $region11: #{tpu_custom_call.1} parent=1 // pred_check_branch
      %31 = sbr.rel (0) target = $region13
    $region12: #{tpu_custom_call.1} parent=1 // pred_region
      %32 = dma.done [#allocation3], 128
    $region13: #{tpu_custom_call.1} parent=1 // pred_fallthru
      _
    // Predicated region
    $region14: #{tpu_custom_call.1} parent=1 // pred_check
      _
    $region15: #{tpu_custom_call.1} parent=1 // pred_check_branch
      %34 = sbr.rel (0) target = $region17
    $region16: #{tpu_custom_call.1} parent=1 // pred_region
      %35 = dma.done [#allocation6], 128
    $region17: #{tpu_custom_call.1} parent=1 // pred_fallthru
      _
    %v36 = vld [vmem:[#allocation2] sm:$0xff]
    %v37 = vld [vmem:[#allocation5] sm:$0xff]
    %v38 = vsub.f32 1.0, %v37
    %vm39 = vcmask 130048
    %v40 = vsel %vm39, %v36, -inf
    %41 = vmax.xlane.f32.xlu0 %v40
    %v42 = vpop.xlane.xlu0 %41
    %v43 = vsel %vm39, %v36, inf
    %44 = vmin.xlane.f32.xlu0 %v43
    %v45 = vpop.xlane.xlu0 %44
    %v46 = vadd.f32 %v42, %v45
    %v47 = vmul.f32 %v46, 0.5
    %v48 = vsub.f32 %v47, %v36
    %v49 = vmul.f32 %v48, 1.442695
    %v50 = vpow.pop %v49
    %v51 = vmul.f32 %v37, %v50
    %v52 = vsel %vm39, %v51, 0.0
    %53 = vadd.xlane.f32.xlu0 %v52
    %v54 = vpop.xlane.xlu0 %53
    %v55 = vsub.f32 %v36, %v47
    %v56 = vmul.f32 %v55, 1.442695
    %v57 = vpow.pop %v56
    %v58 = vmul.f32 %v38, %v57
    %v59 = vsel %vm39, %v58, 0.0
    %60 = vadd.xlane.f32.xlu0 %v59
    %v61 = vpop.xlane.xlu0 %60
    %v62 = vmul.f32 %v54, %v61
    %v63 = vsel %vm39, %v37, 0.0
    %64 = vadd.xlane.f32.xlu0 %v63
    %v65 = vpop.xlane.xlu0 %64
    %v66 = vsel %vm39, %v38, 0.0
    %67 = vadd.xlane.f32.xlu0 %v66
    %v68 = vpop.xlane.xlu0 %67
    %v69 = vmul.f32 %v65, %v68
    %v70 = vrcp.pop %v69
    %v71 = vmul.f32 %v62, %v70
    %vm72 = vcmask 7168
    %v73 = vsel %vm72, %v71, 0.0
    %74 = vadd.xlane.f32.xlu0 %v73
    %v75 = vpop.xlane.xlu0 %74
    %v76 = vrot.slane %v75, 4
    %v77 = vadd.f32 %v75, %v76
    %v78 = vrot.slane %v77, 2
    %v79 = vadd.f32 %v77, %v78
    %v80 = vrot.slane %v79, 1
    %v81 = vadd.f32 %v79, %v80
    %s82 = vtos %v81
    %s83 = smul.f32 %s82, 0.125
    %v84 = vstv %s83
    %85 = vst [vmem:[#allocation7] sm:$0x1] %v84
    // Predicated region
    $region18: #{tpu_custom_call.1} parent=1 // pred_check
      _
    $region19: #{tpu_custom_call.1} parent=1 // pred_check_branch
      %87 = sbr.rel (0) target = $region21
    $region20: #{tpu_custom_call.1} parent=1 // pred_region
      %s89 = ssub.s32 16, 16
      %90 = vsyncadd [#allocation4], %s89
      %s92 = sshll.u32 [#allocation7], 4
      %s93 = int_to_ptr.vmem [resolvable:$true] %s92
      %95 = dma.vmem_to_hbm [thread:$0]  %s93, 16, %s2, [#allocation4]
    $region21: #{tpu_custom_call.1} parent=1 // pred_fallthru
      _
    // Predicated region
    $region22: #{tpu_custom_call.1} parent=1 // pred_check
      _
    $region23: #{tpu_custom_call.1} parent=1 // pred_check_branch
      %97 = sbr.rel (0) target = $region25
    $region24: #{tpu_custom_call.1} parent=1 // pred_region
      %98 = dma.done [#allocation4], 16
    $region25: #{tpu_custom_call.1} parent=1 // pred_fallthru
      _
    %99 = vsyncpa [#allocation3], 1
    %100 = vsyncpa [#allocation6], 1
    %101 = vsyncpa [#allocation4], 1

</llo_original>
